<compile_context>
chip_gen: v7x
topology: tpu7x:2x2x1
jax: 0.10.0
libtpu: 0.0.40
codegen_flags: <defaults>
</compile_context>

<pallas_src>
import math

import jax
import jax.numpy as jnp
from jax.experimental import pallas as pl
from jax.experimental.pallas import tpu as pltpu


def _round_up(x, m):
    return ((x + m - 1) // m) * m


# ---------------------------------------------------------------------------
# Kernels
# ---------------------------------------------------------------------------
def _xa_kernel(x_ref, at_ref, xa_ref, acc_ref):
    """xa = x @ (scaling * A^T).  Grid = (M tiles, K tiles); K is reduction."""
    k = pl.program_id(1)

    @pl.when(k == 0)
    def _():
        acc_ref[...] = jnp.zeros_like(acc_ref)

    acc_ref[...] += jnp.dot(x_ref[...], at_ref[...],
                            preferred_element_type=jnp.float32)

    @pl.when(k == pl.num_programs(1) - 1)
    def _():
        xa_ref[...] = acc_ref[...].astype(xa_ref.dtype)


def _lora_linear_kernel(x_ref, wt_ref, bias_ref, xa_ref, bt_ref, o_ref,
                        acc_ref):
    """out = x @ W^T + bias + xa @ B^T.  Grid = (M, N, K tiles); K reduction."""
    k = pl.program_id(2)

    @pl.when(k == 0)
    def _():
        acc_ref[...] = jnp.zeros_like(acc_ref)

    acc_ref[...] += jnp.dot(x_ref[...], wt_ref[...],
                            preferred_element_type=jnp.float32)

    @pl.when(k == pl.num_programs(2) - 1)
    def _():
        lora = jnp.dot(xa_ref[...], bt_ref[...],
                       preferred_element_type=jnp.float32)
        o_ref[...] = (acc_ref[...] + bias_ref[...] + lora).astype(o_ref.dtype)


def _linear_kernel(x_ref, wt_ref, bias_ref, o_ref, acc_ref):
    """out = x @ W_eff^T + bias (merged-weight inference path)."""
    k = pl.program_id(2)

    @pl.when(k == 0)
    def _():
        acc_ref[...] = jnp.zeros_like(acc_ref)

    acc_ref[...] += jnp.dot(x_ref[...], wt_ref[...],
                            preferred_element_type=jnp.float32)

    @pl.when(k == pl.num_programs(2) - 1)
    def _():
        o_ref[...] = (acc_ref[...] + bias_ref[...]).astype(o_ref.dtype)


# ---------------------------------------------------------------------------
# One-time weight preparation (cache the result across forward calls)
# ---------------------------------------------------------------------------
def prepare_lora_linear(weight, bias, lora_A, lora_B, lora_alpha, r, *,
                        compute_dtype=jnp.float32, merge_weights=False,
                        tn_target=512, tk_target=1024):
    """Pad/transpose/cast the frozen operands once.

    weight: (out, in), bias: (out,) or None, lora_A: (r, in), lora_B: (out, r).
    compute_dtype: matmul input dtype (jnp.bfloat16 recommended on v6e/v7x).
    merge_weights: fold scaling*A^T@B^T into W^T (frozen-weight inference).
    """
    out_features, in_features = weight.shape
    scaling = float(lora_alpha) / float(r)
    compute_dtype = jnp.dtype(compute_dtype)

    tk = min(tk_target, _round_up(in_features, 128))
    tn = min(tn_target, _round_up(out_features, 128))
    r_pad = _round_up(r, 128)
    Kp = _round_up(in_features, tk)
    Np = _round_up(out_features, tn)

    w_t = weight.T.astype(jnp.float32)                       # (K, N)
    a_t_scaled = lora_A.T.astype(jnp.float32) * scaling      # (K, r)
    b_t = lora_B.T.astype(jnp.float32)                       # (r, N)

    if bias is None:
        bias_f32 = jnp.zeros((out_features,), jnp.float32)
    else:
        bias_f32 = bias.astype(jnp.float32)
    biasp = jnp.zeros((1, Np), jnp.float32).at[0, :out_features].set(bias_f32)

    prep = dict(
        in_features=in_features, out_features=out_features,
        compute_dtype=compute_dtype, merged=bool(merge_weights),
        tk=tk, tn=tn, r_pad=r_pad, Kp=Kp, Np=Np, biasp=biasp,
    )

    if merge_weights:
        w_eff_t = w_t + a_t_scaled @ b_t                     # (K, N), f32
        wtp = jnp.zeros((Kp, Np), compute_dtype).at[
            :in_features, :out_features].set(w_eff_t.astype(compute_dtype))
        prep.update(wtp=wtp, atp=None, btp=None)
    else:
        wtp = jnp.zeros((Kp, Np), compute_dtype).at[
            :in_features, :out_features].set(w_t.astype(compute_dtype))
        atp = jnp.zeros((Kp, r_pad), compute_dtype).at[
            :in_features, :r].set(a_t_scaled.astype(compute_dtype))
        btp = jnp.zeros((r_pad, Np), compute_dtype).at[
            :r, :out_features].set(b_t.astype(compute_dtype))
        prep.update(wtp=wtp, atp=atp, btp=btp)

    return prep


# ---------------------------------------------------------------------------
# Per-call forward (only x is padded/cast here)
# ---------------------------------------------------------------------------
def lora_linear_forward(x, prep, *, tm_target=None):
    """LoRALinear forward using prepared (cached) weight operands."""
    # TODO(synk): lora_dropout with p > 0 (training mode) is not implemented
    # in-kernel; the module default p=0.0 is an identity and is what we match.
    in_features = prep["in_features"]
    out_features = prep["out_features"]
    compute_dtype = prep["compute_dtype"]
    tk, tn = prep["tk"], prep["tn"]
    Kp, Np = prep["Kp"], prep["Np"]
    r_pad = prep["r_pad"]

    leading = x.shape[:-1]
    x2d = x.reshape(-1, in_features)
    M = x2d.shape[0]

    is_bf16 = compute_dtype == jnp.dtype(jnp.bfloat16)
    sub = 16 if is_bf16 else 8
    if tm_target is None:
        tm_target = 1024 if is_bf16 else 512

    tm = min(tm_target, _round_up(M, sub))
    Mp = _round_up(M, tm)

    # v7x dual-TensorCore: guarantee >= 2 "parallel" (i, j) tiles when possible.
    if Mp // tm == 1 and Np // tn == 1 and tm % (2 * sub) == 0:
        tm //= 2
        Mp = _round_up(M, tm)

    xp = jnp.zeros((Mp, Kp), compute_dtype).at[:M, :in_features].set(
        x2d.astype(compute_dtype))

    out_dtype = x.dtype
    grid = (Mp // tm, Np // tn, Kp // tk)

    if prep["merged"]:
        out_p = pl.pallas_call(
            _linear_kernel,
            out_shape=jax.ShapeDtypeStruct((Mp, Np), out_dtype),
            grid_spec=pltpu.PrefetchScalarGridSpec(
                num_scalar_prefetch=0, grid=grid,
                in_specs=[
                    pl.BlockSpec((tm, tk), lambda i, j, k: (i, k)),      # x
                    pl.BlockSpec((tk, tn), lambda i, j, k: (k, j)),      # W_eff^T
                    pl.BlockSpec((1, tn), lambda i, j, k: (0, j)),       # bias
                ],
                out_specs=pl.BlockSpec((tm, tn), lambda i, j, k: (i, j)),
                scratch_shapes=[pltpu.VMEM((tm, tn), jnp.float32)],
            ),
            compiler_params=pltpu.CompilerParams(
                dimension_semantics=("parallel", "parallel", "arbitrary")),
        )(xp, prep["wtp"], prep["biasp"])
    else:
        # Pass 1: xa = x @ (scaling * A^T), computed once per row tile.
        xa = pl.pallas_call(
            _xa_kernel,
            out_shape=jax.ShapeDtypeStruct((Mp, r_pad), compute_dtype),
            grid_spec=pltpu.PrefetchScalarGridSpec(
                num_scalar_prefetch=0, grid=(Mp // tm, Kp // tk),
                in_specs=[
                    pl.BlockSpec((tm, tk), lambda i, k: (i, k)),
                    pl.BlockSpec((tk, r_pad), lambda i, k: (k, 0)),
                ],
                out_specs=pl.BlockSpec((tm, r_pad), lambda i, k: (i, 0)),
                scratch_shapes=[pltpu.VMEM((tm, r_pad), jnp.float32)],
            ),
            compiler_params=pltpu.CompilerParams(
                dimension_semantics=("parallel", "arbitrary")),
        )(xp, prep["atp"])

        # Pass 2: out = x @ W^T + bias + xa @ B^T.  xa's index_map (i, 0) is
        # constant across j/k, so it is only re-fetched when the row tile moves.
        out_p = pl.pallas_call(
            _lora_linear_kernel,
            out_shape=jax.ShapeDtypeStruct((Mp, Np), out_dtype),
            grid_spec=pltpu.PrefetchScalarGridSpec(
                num_scalar_prefetch=0, grid=grid,
                in_specs=[
                    pl.BlockSpec((tm, tk), lambda i, j, k: (i, k)),      # x
                    pl.BlockSpec((tk, tn), lambda i, j, k: (k, j)),      # W^T
                    pl.BlockSpec((1, tn), lambda i, j, k: (0, j)),       # bias
                    pl.BlockSpec((tm, r_pad), lambda i, j, k: (i, 0)),   # xa
                    pl.BlockSpec((r_pad, tn), lambda i, j, k: (0, j)),   # B^T
                ],
                out_specs=pl.BlockSpec((tm, tn), lambda i, j, k: (i, j)),
                scratch_shapes=[pltpu.VMEM((tm, tn), jnp.float32)],
            ),
            compiler_params=pltpu.CompilerParams(
                dimension_semantics=("parallel", "parallel", "arbitrary")),
        )(xp, prep["wtp"], prep["biasp"], xa, prep["btp"])

    out2d = out_p[:M, :out_features].astype(out_dtype)
    return out2d.reshape(*leading, out_features)


# ---------------------------------------------------------------------------
# Pure-JAX reference + test harness
# ---------------------------------------------------------------------------
def lora_linear_reference(x, weight, bias, lora_A, lora_B, lora_alpha, r):
    """Pure-JAX reference matching the PyTorch forward (dropout p=0)."""
    scaling = lora_alpha / r
    with jax.default_matmul_precision("highest"):
        lora_update = lora_B @ lora_A                     # (out, in)
        return x @ weight.T + bias + (x @ lora_update.T) * scaling


def _make_params(key, in_features, out_features, r, b_scale):
    k_w, k_b, k_a, k_bB = jax.random.split(key, 4)
    bound = 1.0 / math.sqrt(in_features)
    weight = jax.random.uniform(k_w, (out_features, in_features),
                                minval=-bound, maxval=bound, dtype=jnp.float32)
    bias = jax.random.uniform(k_b, (out_features,),
                              minval=-bound, maxval=bound, dtype=jnp.float32)
    # lora_A: kaiming_uniform(a=sqrt(5)); lora_B: module inits to zeros, but we
    # use nonzero values so the LoRA path is actually exercised.
    a_bound = math.sqrt(6.0 / (1.0 + 5.0)) / math.sqrt(in_features)
    lora_A = jax.random.uniform(k_a, (r, in_features),
                                minval=-a_bound, maxval=a_bound,
                                dtype=jnp.float32)
    lora_B = b_scale * jax.random.normal(k_bB, (out_features, r),
                                         dtype=jnp.float32)
    return weight, bias, lora_A, lora_B


if __name__ == "__main__":
    key = jax.random.PRNGKey(0)
    k1, k2, k3, k4, k5 = jax.random.split(key, 5)

    # --- Test 1: small 3-D input, f32 compute, unmerged LoRA path. ---------
    batch, seq, in_f, out_f, r = 2, 8, 32, 64, 4
    lora_alpha = 1.0
    x = jax.random.normal(k1, (batch, seq, in_f), dtype=jnp.float32)
    weight, bias, lora_A, lora_B = _make_params(k2, in_f, out_f, r, b_scale=0.1)

    prep_f32 = prepare_lora_linear(weight, bias, lora_A, lora_B, lora_alpha, r)
    out = jax.block_until_ready(lora_linear_forward(x, prep_f32))
    ref = lora_linear_reference(x, weight, bias, lora_A, lora_B, lora_alpha, r)
    assert out.shape == (batch, seq, out_f)
    assert jnp.allclose(out, ref, atol=2e-3, rtol=2e-3), "f32 mismatch"

    # Reuse the same prepared weights for a 2-D input (module's x.dim()==2 path).
    x2 = jax.random.normal(k5, (5, in_f), dtype=jnp.float32)
    out2 = jax.block_until_ready(lora_linear_forward(x2, prep_f32))
    ref2 = lora_linear_reference(x2, weight, bias, lora_A, lora_B, lora_alpha, r)
    assert out2.shape == (5, out_f)
    assert jnp.allclose(out2, ref2, atol=2e-3, rtol=2e-3), "2-D f32 mismatch"

    # --- Test 2: same problem, bf16 compute dtype (v6e/v7x fast path). -----
    prep_bf16 = prepare_lora_linear(weight, bias, lora_A, lora_B, lora_alpha, r,
                                    compute_dtype=jnp.bfloat16)
    out_bf16 = jax.block_until_ready(lora_linear_forward(x, prep_bf16))
    assert jnp.allclose(out_bf16, ref, atol=1e-1, rtol=5e-2), "bf16 mismatch"

    # --- Test 3: merged-weight inference path (single matmul kernel). ------
    prep_merged = prepare_lora_linear(weight, bias, lora_A, lora_B, lora_alpha,
                                      r, merge_weights=True)
    out_m = jax.block_until_ready(lora_linear_forward(x, prep_merged))
    assert jnp.allclose(out_m, ref, atol=2e-3, rtol=2e-3), "merged mismatch"

    # --- Test 4: ragged shapes with forced-small tiles -> multi-tile grid. --
    batch3, seq3, in3, out3, r3 = 2, 70, 300, 260, 8
    x3 = jax.random.normal(k3, (batch3, seq3, in3), dtype=jnp.float32)
    w3, b3, a3, bB3 = _make_params(k4, in3, out3, r3, b_scale=0.5)
    prep3 = prepare_lora_linear(w3, b3, a3, bB3, lora_alpha, r3,
                                tn_target=128, tk_target=128)
    out3_k = jax.block_until_ready(
        lora_linear_forward(x3, prep3, tm_target=64))
    ref3 = lora_linear_reference(x3, w3, b3, a3, bB3, lora_alpha, r3)
    assert out3_k.shape == (batch3, seq3, out3)
    assert jnp.allclose(out3_k, ref3, atol=2e-2, rtol=2e-2), \
        "multi-tile f32 mismatch"

    print("KERNEL_OK")
</pallas_src>

<mosaic_0001>
module attributes {stable_mosaic.version = 11 : i64} {
  func.func @_xa_kernel(%arg0: i32, %arg1: i32, %arg2: memref<8x128xf32, #tpu.memory_space<vmem>>, %arg3: memref<128x128xf32, #tpu.memory_space<vmem>>, %arg4: memref<8x128xf32, #tpu.memory_space<vmem>>, %arg5: memref<8x128xf32, #tpu.memory_space<vmem>>) attributes {dimension_semantics = [#tpu.dimension_semantics<parallel>, #tpu.dimension_semantics<arbitrary>], iteration_bounds = array<i64: 2, 1>, scalar_prefetch = 0 : i64, scratch_operands = 1 : i64, tpu.core_type = #tpu.core_type<tc>, window_params = [{transform_indices = @transform_0, window_bounds = array<i64: 8, 128>}, {transform_indices = @transform_1, window_bounds = array<i64: 128, 128>}, {transform_indices = @transform_2, window_bounds = array<i64: 8, 128>}]} {
    %c0_i32 = arith.constant 0 : i32
    %0 = arith.cmpi eq, %arg1, %c0_i32 : i32
    %1 = arith.extui %0 : i1 to i32
    %c0_i32_0 = arith.constant 0 : i32
    %2 = arith.cmpi ne, %1, %c0_i32_0 : i32
    scf.if %2 {
      %cst_10 = arith.constant 0.000000e+00 : f32
      %12 = vector.broadcast %cst_10 : f32 to vector<8x128xf32>
      %c0_11 = arith.constant 0 : index
      %c0_12 = arith.constant 0 : index
      %13 = vector.load %arg5[%c0_11, %c0_12] : memref<8x128xf32, #tpu.memory_space<vmem>>, vector<8x128xf32>
      tpu.vector_store %arg5[%c0_11, %c0_12], %12 {strides = array<i32>} : memref<8x128xf32, #tpu.memory_space<vmem>>, vector<8x128xf32>,
    } else {
    }
    %c0 = arith.constant 0 : index
    %c0_1 = arith.constant 0 : index
    %3 = vector.load %arg5[%c0, %c0_1] : memref<8x128xf32, #tpu.memory_space<vmem>>, vector<8x128xf32>
    %c0_2 = arith.constant 0 : index
    %c0_3 = arith.constant 0 : index
    %4 = vector.load %arg2[%c0_2, %c0_3] : memref<8x128xf32, #tpu.memory_space<vmem>>, vector<8x128xf32>
    %c0_4 = arith.constant 0 : index
    %c0_5 = arith.constant 0 : index
    %5 = vector.load %arg3[%c0_4, %c0_5] : memref<128x128xf32, #tpu.memory_space<vmem>>, vector<128x128xf32>
    %cst = arith.constant dense<0.000000e+00> : vector<8x128xf32>
    %6 = tpu.matmul %4, %5, %cst {dimension_numbers = #tpu.dot_dimension_numbers<[1], [0], [0], [1], [0, 0, 1, 1], [], []>} : vector<8x128xf32>, vector<128x128xf32>, vector<8x128xf32> -> vector<8x128xf32>
    %7 = arith.addf %3, %6 : vector<8x128xf32>
    %c0_6 = arith.constant 0 : index
    %c0_7 = arith.constant 0 : index
    %8 = vector.load %arg5[%c0_6, %c0_7] : memref<8x128xf32, #tpu.memory_space<vmem>>, vector<8x128xf32>
    tpu.vector_store %arg5[%c0_6, %c0_7], %7 {strides = array<i32>} : memref<8x128xf32, #tpu.memory_space<vmem>>, vector<8x128xf32>,
    %c0_i32_8 = arith.constant 0 : i32
    %9 = arith.cmpi eq, %arg1, %c0_i32_8 : i32
    %10 = arith.extui %9 : i1 to i32
    %c0_i32_9 = arith.constant 0 : i32
    %11 = arith.cmpi ne, %10, %c0_i32_9 : i32
    scf.if %11 {
      %c0_10 = arith.constant 0 : index
      %c0_11 = arith.constant 0 : index
      %12 = vector.load %arg5[%c0_10, %c0_11] : memref<8x128xf32, #tpu.memory_space<vmem>>, vector<8x128xf32>
      %c0_12 = arith.constant 0 : index
      %c0_13 = arith.constant 0 : index
      %13 = vector.load %arg4[%c0_12, %c0_13] : memref<8x128xf32, #tpu.memory_space<vmem>>, vector<8x128xf32>
      tpu.vector_store %arg4[%c0_12, %c0_13], %12 {strides = array<i32>} : memref<8x128xf32, #tpu.memory_space<vmem>>, vector<8x128xf32>,
    } else {
    }
    return
  }
  func.func @transform_0(%arg0: i32, %arg1: i32) -> (i32, i32) {
    %c0_i32 = arith.constant 0 : i32
    return %arg0, %arg1 : i32, i32
  }
  func.func @transform_1(%arg0: i32, %arg1: i32) -> (i32, i32) {
    %c0_i32 = arith.constant 0 : i32
    %c0_i32_0 = arith.constant 0 : i32
    return %arg1, %c0_i32 : i32, i32
  }
  func.func @transform_2(%arg0: i32, %arg1: i32) -> (i32, i32) {
    %c0_i32 = arith.constant 0 : i32
    %c0_i32_0 = arith.constant 0 : i32
    return %arg0, %c0_i32 : i32, i32
  }
}

</mosaic_0001>

<llo_original>
// kernel: tpu_custom_call.1
$region0: #{tpu_custom_call.1}
  #allocation0 [shape = 'u32[]', space=smem, size = 0x4, offset = 0x4, fixed_abs, tag = 'smem constant byte address 0x4 - core index']
  #allocation1 [shape = 'u32[144,128]{1,0:T(1,128)}', space=vmem, size = 0x12000, scoped, tag = 'internal scratch']
  #allocation2 [shape = 'f32[8,128]{1,0:T(8,128)}', space=vmem, size = 0x1000, scoped, tag = 'scratch operand']
  %s0 = inlined_call_operand.hbm [shape: f32[16,128], index: 0, kind: input, shape index: {}]
  %s1 = inlined_call_operand.hbm [shape: f32[128,128], index: 1, kind: input, shape index: {}]
  %s2 = inlined_call_operand.hbm [shape: f32[16,128], index: 2, kind: output, shape index: {}]
  %s3 = sld [smem:[#allocation0]]
  $region57: #{tpu_custom_call.1} parent=0
    _
  %s5 = ssub.s32 1, %s3
  %s6 = scalar_select 0, %s5, %s3
  $region1: #{tpu_custom_call.1} parent=0
    #allocation3 [shape = 'u8[8192]{0}', space=vmem, size = 0x2000, scoped, tag = 'input window, operand 0']
    #allocation4 [shape = 's32[2]{0}', space=sflag, size = 0x8, scoped, tag = 'scoped memory for tpu_custom_call.1']
    #allocation5 [shape = 's32[2]{0}', space=sflag, size = 0x8, scoped, tag = 'scoped memory for tpu_custom_call.1']
    #allocation6 [shape = 'u8[65536]{0}', space=vmem, size = 0x10000, scoped, tag = 'input window, operand 1, single buffered']
    #allocation7 [shape = 's32[1]{0}', space=sflag, size = 0x4, scoped, tag = 'scoped memory for tpu_custom_call.1']
    #allocation8 [shape = 'u8[8192]{0}', space=vmem, size = 0x2000, scoped, tag = 'output window, operand 0']
    %7 = vsyncpa [#allocation4], 0
    %s8 = scalar_lea.sflag [#allocation4], 1
    %9 = vsyncpa %s8, 0
    %10 = vsyncpa [#allocation7], 0
    %11 = vsyncpa [#allocation5], 0
    %s12 = scalar_lea.sflag [#allocation5], 1
    %13 = vsyncpa %s12, 0
    loop: start=0, step=1, limit=4
    $region2: #{tpu_custom_call.1} parent=1 // loop_pre_header
      _
    $region3: #{tpu_custom_call.1} parent=1 // loop_header
      %s15 = sphi 0, %s19
      %p16 = scmp.ge.s32.totalorder %s15, 4
      %s22 = sphi 0, %s34
      %s23 = sphi 0, %s30
      %s24 = sphi 0, %s22
      %s25 = sphi 0, %s23
      %s26 = sphi 0, %s24
      %s27 = sphi 0, %s25
      %s39 = sphi 0, %s41
      %s42 = sphi 0, %s39
      %s43 = sphi 0, %s42
      %s59 = sphi 0, %s43
      %s65 = sphi 0, %s67
      %s68 = sphi 0, %s65
      %s69 = sphi 0, %s68
      %s85 = sphi 0, %s69
      %s91 = sphi 0, %s93
      %s94 = sphi 0, %s91
      %s95 = sphi 0, %s94
      %s111 = sphi 0, %s95
    $region4: #{tpu_custom_call.1} parent=1 // loop_header_branch
      %18 = sbr.rel (%p16) target = $region8
    $region5: #{tpu_custom_call.1} parent=1 // loop_body
      %s20 = ssub.s32 %s15, 1
      %s21 = ssub.s32 %s15, 2
      %s28 = sadd.s32 1, %s23
      %p29 = scmp.ge.s32.totalorder %s28, 1
      %s30 = scalar_select %p29, 0, %s28
      %s31 = sadd.s32 1, %s22
      %s32 = scalar_select %p29, %s31, %s22
      %p33 = scmp.ge.s32.totalorder %s32, 2
      %s34 = scalar_select %p33, 0, %s32
      %s35 = ssub.s32 %s22, %s34
      %s36 = ssub.s32 %s23, %s30
      %s37 = sor.u32 %s35, %s36
      %p38 = scmp.eq.s32.totalorder %s37, 0
      %s40 = sadd.s32 %s39, 1
      %s41 = scalar_select %p38, %s39, %s40
      %p44 = pneg %p38
      %p45 = scmp.eq.s32.totalorder %s15, 1
      %p46 = por %p44, %p45
      %p47 = scmp.ne.s32.totalorder %s39, %s42
      %p48 = scmp.eq.s32.totalorder %s15, 0
      %p49 = por %p47, %p48
      %p50 = scmp.ne.s32.totalorder %s39, %s42
      %p51 = scmp.eq.s32.totalorder %s20, 1
      %p52 = por %p50, %p51
      %p53 = scmp.ne.s32.totalorder %s42, %s43
      %p54 = scmp.eq.s32.totalorder %s20, 0
      %p55 = por %p53, %p54
      %p56 = scmp.ne.s32.totalorder %s42, %s43
      %p57 = scmp.eq.s32.totalorder %s21, 1
      %p58 = por %p56, %p57
      %p60 = scmp.ne.s32.totalorder %s43, %s59
      %p61 = scmp.eq.s32.totalorder %s21, 0
      %p62 = por %p60, %p61
      %s63 = ssub.s32 %s23, %s30
      %p64 = scmp.eq.s32.totalorder %s63, 0
      %s66 = sadd.s32 %s65, 1
      %s67 = scalar_select %p64, %s65, %s66
      %p70 = pneg %p64
      %p71 = scmp.eq.s32.totalorder %s15, 1
      %p72 = por %p70, %p71
      %p73 = scmp.ne.s32.totalorder %s65, %s68
      %p74 = scmp.eq.s32.totalorder %s15, 0
      %p75 = por %p73, %p74
      %p76 = scmp.ne.s32.totalorder %s65, %s68
      %p77 = scmp.eq.s32.totalorder %s20, 1
      %p78 = por %p76, %p77
      %p79 = scmp.ne.s32.totalorder %s68, %s69
      %p80 = scmp.eq.s32.totalorder %s20, 0
      %p81 = por %p79, %p80
      %p82 = scmp.ne.s32.totalorder %s68, %s69
      %p83 = scmp.eq.s32.totalorder %s21, 1
      %p84 = por %p82, %p83
      %p86 = scmp.ne.s32.totalorder %s69, %s85
      %p87 = scmp.eq.s32.totalorder %s21, 0
      %p88 = por %p86, %p87
      %s89 = ssub.s32 %s22, %s34
      %p90 = scmp.eq.s32.totalorder %s89, 0
      %s92 = sadd.s32 %s91, 1
      %s93 = scalar_select %p90, %s91, %s92
      %p96 = pneg %p90
      %p97 = scmp.eq.s32.totalorder %s15, 1
      %p98 = por %p96, %p97
      %p99 = scmp.ne.s32.totalorder %s91, %s94
      %p100 = scmp.eq.s32.totalorder %s15, 0
      %p101 = por %p99, %p100
      %p102 = scmp.ne.s32.totalorder %s91, %s94
      %p103 = scmp.eq.s32.totalorder %s20, 1
      %p104 = por %p102, %p103
      %p105 = scmp.ne.s32.totalorder %s94, %s95
      %p106 = scmp.eq.s32.totalorder %s20, 0
      %p107 = por %p105, %p106
      %p108 = scmp.ne.s32.totalorder %s94, %s95
      %p109 = scmp.eq.s32.totalorder %s21, 1
      %p110 = por %p108, %p109
      %p112 = scmp.ne.s32.totalorder %s95, %s111
      %p113 = scmp.eq.s32.totalorder %s21, 0
      %p114 = por %p112, %p113
      %p115 = scmp.le.s32.totalorder 1, %s15
      %p116 = scmp.lt.s32.totalorder %s15, 3
      %p117 = pnand %p115, %p116
      %p118 = pneg %p117
      // Predicated region
      $region9: #{tpu_custom_call.1} parent=5 // pred_check
        _
      $region10: #{tpu_custom_call.1} parent=5 // pred_check_branch
        %120 = sbr.rel (%p117) target = $region12
      $region11: #{tpu_custom_call.1} parent=5 // pred_region
        %s121 = ssub.s32 %s15, 1
        // Predicated region
        $region13: #{tpu_custom_call.1} parent=11 // pred_check
          %p122 = pneg %p81
        $region14: #{tpu_custom_call.1} parent=11 // pred_check_branch
          %124 = sbr.rel (%p122) target = $region16
        $region15: #{tpu_custom_call.1} parent=11 // pred_region
          %s125 = smul.u32 16, %s25
          %s127 = ssub.s32 2048, 2048
          %128 = vsyncadd [#allocation7], %s127
          %s129 = smul.addr %s125, 128
          %s130 = scalar_lea.hbm %s1, %s129
          %s131 = sshll.u32 [#allocation6], 4
          %s132 = int_to_ptr.vmem [resolvable:$true] %s131
          %137 = dma.hbm_to_vmem [thread:$0]  %s130, 2048, %s132, [#allocation7], 128, 128, 8
        $region16: #{tpu_custom_call.1} parent=11 // pred_fallthru
          _
      $region12: #{tpu_custom_call.1} parent=5 // pred_fallthru
        _
      %p138 = scmp.lt.s32.totalorder %s15, 2
      // Predicated region
      $region17: #{tpu_custom_call.1} parent=5 // pred_check
        %p139 = pneg %p138
      $region18: #{tpu_custom_call.1} parent=5 // pred_check_branch
        %141 = sbr.rel (%p139) target = $region20
      $region19: #{tpu_custom_call.1} parent=5 // pred_region
        // Predicated region
        $region21: #{tpu_custom_call.1} parent=19 // pred_check
          %p142 = pneg %p49
        $region22: #{tpu_custom_call.1} parent=19 // pred_check_branch
          %144 = sbr.rel (%p142) target = $region24
        $region23: #{tpu_custom_call.1} parent=19 // pred_region
          %s145 = sand.u32 %s39, 1
          %s146 = scalar_lea.sflag [#allocation4], %s145
          %s147 = sand.u32 %s39, 1
          %s148 = smul.addr %s147, 8
          %s149 = scalar_lea.vmem [#allocation3], %s148
          %s151 = ssub.s32 128, 128
          %152 = vsyncadd %s146, %s151
          %s153 = sadd.s32 %s23, %s22
          %s154 = smul.addr %s153, 128
          %s155 = scalar_lea.hbm %s0, %s154
          %s157 = sshll.u32 %s149, 4
          %s158 = int_to_ptr.vmem [resolvable:$true] %s157
          %160 = dma.hbm_to_vmem [thread:$0]  %s155, 128, %s158, %s146
        $region24: #{tpu_custom_call.1} parent=19 // pred_fallthru
          _
      $region20: #{tpu_custom_call.1} parent=5 // pred_fallthru
        _
      %p161 = scmp.le.s32.totalorder 1, %s15
      %p162 = scmp.lt.s32.totalorder %s15, 3
      %p163 = pnand %p161, %p162
      %p164 = pneg %p163
      // Predicated region
      $region25: #{tpu_custom_call.1} parent=5 // pred_check
        _
      $region26: #{tpu_custom_call.1} parent=5 // pred_check_branch
        %166 = sbr.rel (%p163) target = $region28
      $region27: #{tpu_custom_call.1} parent=5 // pred_region
        %s167 = ssub.s32 %s15, 1
        %s168 = sand.u32 %s42, 1
        %s169 = scalar_lea.sflag [#allocation4], %s168
        %s170 = sand.u32 %s42, 1
        %s171 = smul.addr %s170, 8
        %s172 = scalar_lea.vmem [#allocation3], %s171
        // Predicated region
        $region29: #{tpu_custom_call.1} parent=27 // pred_check
          %p173 = pneg %p55
        $region30: #{tpu_custom_call.1} parent=27 // pred_check_branch
          %175 = sbr.rel (%p173) target = $region32
        $region31: #{tpu_custom_call.1} parent=27 // pred_region
          %176 = dma.done %s169, 128
        $region32: #{tpu_custom_call.1} parent=27 // pred_fallthru
          _
        // Predicated region
        $region33: #{tpu_custom_call.1} parent=27 // pred_check
          %p177 = pneg %p81
        $region34: #{tpu_custom_call.1} parent=27 // pred_check_branch
          %179 = sbr.rel (%p177) target = $region36
        $region35: #{tpu_custom_call.1} parent=27 // pred_region
          %180 = dma.done [#allocation7], 2048
        $region36: #{tpu_custom_call.1} parent=27 // pred_fallthru
          _
        %s181 = sand.u32 %s42, 1
        %s182 = scalar_lea.sflag [#allocation4], %s181
        %s183 = sand.u32 %s42, 1
        %s184 = smul.addr %s183, 8
        %s185 = scalar_lea.vmem [#allocation3], %s184
        %p186 = pneg %p55
        %p187 = pneg %p52
        %p188 = pneg %p81
        %p189 = pneg %p78
        %p190 = pneg %p107
        %p191 = pneg %p104
        %s192 = sand.u32 %s94, 1
        %s193 = scalar_lea.sflag [#allocation5], %s192
        %s194 = sand.u32 %s94, 1
        %s195 = smul.addr %s194, 8
        %s196 = scalar_lea.vmem [#allocation8], %s195
        %s197 = smul.u32 16, %s25
        %p198 = scmp.eq.s32.totalorder %s25, 0
        // Predicated region
        $region37: #{tpu_custom_call.1} parent=27 // pred_check
          %p199 = pneg %p198
        $region38: #{tpu_custom_call.1} parent=27 // pred_check_branch
          %201 = sbr.rel (%p199) target = $region40
        $region39: #{tpu_custom_call.1} parent=27 // pred_region
          %202 = vst [vmem:[#allocation2] sm:$0xff] 0.0
        $region40: #{tpu_custom_call.1} parent=27 // pred_fallthru
          _
        %v203 = vld [vmem:[#allocation2] sm:$0xff]
        %v204 = vld [vmem:[%s172] sm:$0xff]
        %v205 = vld [vmem:[#allocation6] sm:$0xff]
        %v206 = vld [vmem:[#allocation6 + $0x8] sm:$0xff]
        %v207 = vld [vmem:[#allocation6 + $0x10] sm:$0xff]
        %v208 = vld [vmem:[#allocation6 + $0x18] sm:$0xff]
        %v209 = vld [vmem:[#allocation6 + $0x20] sm:$0xff]
        %v210 = vld [vmem:[#allocation6 + $0x28] sm:$0xff]
        %v211 = vld [vmem:[#allocation6 + $0x30] sm:$0xff]
        %v212 = vld [vmem:[#allocation6 + $0x38] sm:$0xff]
        %v213 = vld [vmem:[#allocation6 + $0x40] sm:$0xff]
        %v214 = vld [vmem:[#allocation6 + $0x48] sm:$0xff]
        %v215 = vld [vmem:[#allocation6 + $0x50] sm:$0xff]
        %v216 = vld [vmem:[#allocation6 + $0x58] sm:$0xff]
        %v217 = vld [vmem:[#allocation6 + $0x60] sm:$0xff]
        %v218 = vld [vmem:[#allocation6 + $0x68] sm:$0xff]
        %v219 = vld [vmem:[#allocation6 + $0x70] sm:$0xff]
        %v220 = vld [vmem:[#allocation6 + $0x78] sm:$0xff]
        %221 = vmatprep.subr.mxu0 0.0
        %222 = vmatpush1.msra.mxu0 %v205
        %223 = vmatprep.subr.mxu0 0.0
        %224 = vmatpush1.msra.mxu0 %v206
        %225 = vmatprep.subr.mxu0 0.0
        %226 = vmatpush1.msra.mxu0 %v207
        %227 = vmatprep.subr.mxu0 0.0
        %228 = vmatpush1.msra.mxu0 %v208
        %229 = vmatprep.subr.mxu0 0.0
        %230 = vmatpush1.msra.mxu0 %v209
        %231 = vmatprep.subr.mxu0 0.0
        %232 = vmatpush1.msra.mxu0 %v210
        %233 = vmatprep.subr.mxu0 0.0
        %234 = vmatpush1.msra.mxu0 %v211
        %235 = vmatprep.subr.mxu0 0.0
        %236 = vmatpush1.msra.mxu0 %v212
        %237 = vmatprep.subr.mxu0 0.0
        %238 = vmatpush1.msra.mxu0 %v213
        %239 = vmatprep.subr.mxu0 0.0
        %240 = vmatpush1.msra.mxu0 %v214
        %241 = vmatprep.subr.mxu0 0.0
        %242 = vmatpush1.msra.mxu0 %v215
        %243 = vmatprep.subr.mxu0 0.0
        %244 = vmatpush1.msra.mxu0 %v216
        %245 = vmatprep.subr.mxu0 0.0
        %246 = vmatpush1.msra.mxu0 %v217
        %247 = vmatprep.subr.mxu0 0.0
        %248 = vmatpush1.msra.mxu0 %v218
        %249 = vmatprep.subr.mxu0 0.0
        %250 = vmatpush1.msra.mxu0 %v219
        %251 = vmatprep.subr.mxu0 0.0
        %252 = vmatpush1.msra.mxu0 %v220
        %253 = vmatprep.subr.mxu0 0.0
        %254 = vmatpush1.msra.mxu0 0.0
        %255 = vmatprep.subr.mxu0 0.0
        %256 = vmatpush1.msra.mxu0 0.0
        %257 = vmatprep.subr.mxu0 0.0
        %258 = vmatpush1.msra.mxu0 0.0
        %259 = vmatprep.subr.mxu0 0.0
        %260 = vmatpush1.msra.mxu0 0.0
        %261 = vmatprep.subr.mxu0 0.0
        %262 = vmatpush1.msra.mxu0 0.0
        %263 = vmatprep.subr.mxu0 0.0
        %264 = vmatpush1.msra.mxu0 0.0
        %265 = vmatprep.subr.mxu0 0.0
        %266 = vmatpush1.msra.mxu0 0.0
        %267 = vmatprep.subr.mxu0 0.0
        %268 = vmatpush1.msra.mxu0 0.0
        %269 = vmatprep.subr.mxu0 0.0
        %270 = vmatpush1.msra.mxu0 0.0
        %271 = vmatprep.subr.mxu0 0.0
        %272 = vmatpush1.msra.mxu0 0.0
        %273 = vmatprep.subr.mxu0 0.0
        %274 = vmatpush1.msra.mxu0 0.0
        %275 = vmatprep.subr.mxu0 0.0
        %276 = vmatpush1.msra.mxu0 0.0
        %277 = vmatprep.subr.mxu0 0.0
        %278 = vmatpush1.msra.mxu0 0.0
        %279 = vmatprep.subr.mxu0 0.0
        %280 = vmatpush1.msra.mxu0 0.0
        %281 = vmatprep.subr.mxu0 0.0
        %282 = vmatpush1.msra.mxu0 0.0
        %283 = vmatprep.subr.mxu0 0.0
        %284 = vmatpush1.msra.mxu0 0.0
        %285 = vmatprep.mubr.f32.mxu0 0.0
        %286 = vmatmul.mubr.f32.gmra.mrb[0].mxu0 %v204
        %v287 = vpop.f32.mrb[0].mxu0
        %v288 = vadd.f32 0.0, %v287
        %v289 = vpop.f32.mrb[0].mxu0
        %290 = vdwg.mxu0
        %v291 = vadd.f32 %v203, %v288
        %292 = vst [vmem:[#allocation2] sm:$0xff] %v291
        // Predicated region
        $region41: #{tpu_custom_call.1} parent=27 // pred_check
          %p293 = pneg %p198
        $region42: #{tpu_custom_call.1} parent=27 // pred_check_branch
          %295 = sbr.rel (%p293) target = $region44
        $region43: #{tpu_custom_call.1} parent=27 // pred_region
          %v296 = vld [vmem:[#allocation2] sm:$0xff]
          %297 = vst [vmem:[%s196] sm:$0xff] %v296
        $region44: #{tpu_custom_call.1} parent=27 // pred_fallthru
          _
        %s298 = sand.u32 %s94, 1
        %s299 = scalar_lea.sflag [#allocation5], %s298
        %s300 = sand.u32 %s94, 1
        %s301 = smul.addr %s300, 8
        %s302 = scalar_lea.vmem [#allocation8], %s301
        // Predicated region
        $region45: #{tpu_custom_call.1} parent=27 // pred_check
          %p303 = pneg %p104
        $region46: #{tpu_custom_call.1} parent=27 // pred_check_branch
          %305 = sbr.rel (%p303) target = $region48
        $region47: #{tpu_custom_call.1} parent=27 // pred_region
          %s307 = ssub.s32 128, 128
          %308 = vsyncadd %s299, %s307
          %s309 = smul.addr %s24, 128
          %s310 = scalar_lea.hbm %s2, %s309
          %s312 = sshll.u32 %s302, 4
          %s313 = int_to_ptr.vmem [resolvable:$true] %s312
          %315 = dma.vmem_to_hbm [thread:$0]  %s313, 128, %s310, %s299
        $region48: #{tpu_custom_call.1} parent=27 // pred_fallthru
          _
      $region28: #{tpu_custom_call.1} parent=5 // pred_fallthru
        _
      %p316 = scmp.le.s32.totalorder 2, %s15
      // Predicated region
      $region49: #{tpu_custom_call.1} parent=5 // pred_check
        %p317 = pneg %p316
      $region50: #{tpu_custom_call.1} parent=5 // pred_check_branch
        %319 = sbr.rel (%p317) target = $region52
      $region51: #{tpu_custom_call.1} parent=5 // pred_region
        %s320 = ssub.s32 %s15, 2
        // Predicated region
        $region53: #{tpu_custom_call.1} parent=51 // pred_check
          %p321 = pneg %p110
        $region54: #{tpu_custom_call.1} parent=51 // pred_check_branch
          %323 = sbr.rel (%p321) target = $region56
        $region55: #{tpu_custom_call.1} parent=51 // pred_region
          %s324 = sand.u32 %s95, 1
          %s325 = scalar_lea.sflag [#allocation5], %s324
          %s326 = sand.u32 %s95, 1
          %s327 = smul.addr %s326, 8
          %s328 = scalar_lea.vmem [#allocation8], %s327
          %329 = dma.done %s325, 128
        $region56: #{tpu_custom_call.1} parent=51 // pred_fallthru
          _
      $region52: #{tpu_custom_call.1} parent=5 // pred_fallthru
        _
    $region6: #{tpu_custom_call.1} parent=1 // loop_footer
      %s19 = sadd.s32 1, %s15
    $region7: #{tpu_custom_call.1} parent=1 // loop_footer_branch
      %14 = sbr.rel target = $region3
    $region8: #{tpu_custom_call.1} parent=1 // loop_exit
      _
    %330 = vsyncpa [#allocation4], 1
    %s331 = scalar_lea.sflag [#allocation4], 1
    %332 = vsyncpa %s331, 1
    %333 = vsyncpa [#allocation7], 1
    %334 = vsyncpa [#allocation5], 1
    %s335 = scalar_lea.sflag [#allocation5], 1
    %336 = vsyncpa %s335, 1

</llo_original>
